<compile_context>
chip_gen: v7x
topology: tpu7x:2x2x1
jax: 0.10.0
libtpu: 0.0.40
codegen_flags: <defaults>
</compile_context>

<pallas_src>
import functools

import jax
import jax.numpy as jnp
from jax import lax
from jax.experimental import pallas as pl
from jax.experimental.pallas import tpu as pltpu


# ---------------------------------------------------------------------------
# Host-side helpers (tiling, RoPE tables, weight permutation)
# ---------------------------------------------------------------------------

def _round_up(x, m):
    return ((x + m - 1) // m) * m


def _row_tiling(rows, max_tile=256):
    """Row tile (multiple of 8) and padded row count (multiple of the tile)."""
    tr = min(max_tile, _round_up(rows, 8))
    padded = _round_up(rows, tr)
    return tr, padded


def _col_tile(c_out, max_tile=512):
    """Largest of {512,256,128} dividing c_out, else the full dimension."""
    for t in (max_tile, 256, 128):
        if c_out % t == 0:
            return t
    return c_out


def _heads_per_group(num_heads, head_dim):
    """Heads per attention grid step so the group width is 128-lane aligned."""
    if head_dim % 128 == 0:
        return 1
    if 128 % head_dim == 0:
        hpg = 128 // head_dim
        if num_heads % hpg == 0:
            return hpg
    return num_heads  # fallback: one group covering the full C (always legal)


def _build_freqs(head_dim, image_size, patch_size, theta):
    """Mirrors VisionRotaryEmbedding.__init__: cos/sin of shape (seq_len, Dh)."""
    assert head_dim % 2 == 0
    assert image_size % patch_size == 0
    seq_len = (image_size // patch_size) ** 2
    exp = jnp.arange(0, head_dim, 2, dtype=jnp.float32) / (-head_dim)
    inv = jnp.float32(theta) ** exp                      # (Dh//2,)
    t = jnp.arange(seq_len, dtype=jnp.float32)
    f = jnp.einsum("i,j->ij", t, inv)                    # (S, Dh//2)
    f = jnp.concatenate([f, f], axis=-1)                 # torch repeat(1, 2)
    return jnp.cos(f), jnp.sin(f)                        # (S, Dh)


def _build_rope_tables(head_dim, num_extra_tokens, image_size, patch_size, theta):
    """(N, Dh) cos and signed-sin tables in the de-interleaved head layout.

    q/k columns are de-interleaved per head (evens first, odds second) via the
    qkv weight permutation.  In that layout the interleaved pairwise
    rotate_half becomes a half-swap:
        rope(x)[p] = x[p]*cos_d[p] + x[(p + Dh/2) % Dh] * sin_sign_d[p]
    Extra (cls) tokens get cos=1 / sin=0 rows -> identity.
    """
    cos, sin = _build_freqs(head_dim, image_size, patch_size, theta)
    e = num_extra_tokens
    cos = jnp.concatenate([jnp.ones((e, head_dim), jnp.float32), cos], axis=0)
    sin = jnp.concatenate([jnp.zeros((e, head_dim), jnp.float32), sin], axis=0)
    perm = jnp.concatenate([jnp.arange(0, head_dim, 2), jnp.arange(1, head_dim, 2)])
    sign = jnp.where(jnp.arange(head_dim) < head_dim // 2, -1.0, 1.0).astype(jnp.float32)
    return cos[:, perm], sin[:, perm] * sign


def _qkv_col_perm(c, num_heads, head_dim, hpg):
    """Column permutation of the (C, 3C) qkv weight.

    Desired output layout per head-group g: [q heads of g (de-interleaved),
    k heads of g (de-interleaved), v heads of g (natural)] as one contiguous
    3*gw block, so the attention kernel can fetch one lane-aligned block per
    grid step.  v stays natural so the attention output keeps the standard
    head-concatenated layout expected by proj_w.
    """
    deint = jnp.concatenate([jnp.arange(0, head_dim, 2), jnp.arange(1, head_dim, 2)])
    ident = jnp.arange(head_dim)
    parts = []
    for g in range(num_heads // hpg):
        heads = range(g * hpg, (g + 1) * hpg)
        parts.extend([h * head_dim + deint for h in heads])           # q
        parts.extend([c + h * head_dim + deint for h in heads])       # k
        parts.extend([2 * c + h * head_dim + ident for h in heads])   # v
    return jnp.concatenate(parts)


def _compiler_params(*sems):
    return pltpu.CompilerParams(dimension_semantics=sems,
                                vmem_limit_bytes=64 * 1024 * 1024)


# ---------------------------------------------------------------------------
# Kernels
# ---------------------------------------------------------------------------

def _ln_linear_kernel(x_ref, g_ref, b_ref, w_ref, wb_ref, o_ref, *, eps):
    """out = LayerNorm(x) @ W + bias  (LN scale = 1 + gamma, bf16 MXU)."""
    x = x_ref[...].astype(jnp.float32)
    mean = jnp.mean(x, axis=-1, keepdims=True)
    var = jnp.mean((x - mean) ** 2, axis=-1, keepdims=True)
    xn = (x - mean) * lax.rsqrt(var + eps)
    xn = (xn * (1.0 + g_ref[...]) + b_ref[...]).astype(jnp.bfloat16)
    y = jnp.dot(xn, w_ref[...], preferred_element_type=jnp.float32) + wb_ref[...]
    o_ref[...] = y.astype(o_ref.dtype)


def _ln_swiglu_kernel(x_ref, g_ref, b_ref, w1_ref, b1_ref, w2_ref, b2_ref, o_ref,
                      *, eps):
    """out = silu(LN(x) @ W1 + b1) * (LN(x) @ W2 + b2), hidden tile per step."""
    x = x_ref[...].astype(jnp.float32)
    mean = jnp.mean(x, axis=-1, keepdims=True)
    var = jnp.mean((x - mean) ** 2, axis=-1, keepdims=True)
    xn = (x - mean) * lax.rsqrt(var + eps)
    xn = (xn * (1.0 + g_ref[...]) + b_ref[...]).astype(jnp.bfloat16)
    y1 = jnp.dot(xn, w1_ref[...], preferred_element_type=jnp.float32) + b1_ref[...]
    y2 = jnp.dot(xn, w2_ref[...], preferred_element_type=jnp.float32) + b2_ref[...]
    o_ref[...] = (y1 * jax.nn.sigmoid(y1) * y2).astype(o_ref.dtype)


def _linear_residual_kernel(y_ref, w_ref, b_ref, res_ref, o_ref):
    """out = residual + y @ W + bias  (bf16 operands, f32 accumulate/add)."""
    y = jnp.dot(y_ref[...], w_ref[...], preferred_element_type=jnp.float32)
    o_ref[...] = (y + b_ref[...] + res_ref[...].astype(jnp.float32)).astype(o_ref.dtype)


def _attn_rope_kernel(qkv_ref, cos_ref, sin_ref, o_ref, *, hpg, head_dim, scale):
    """Attention for one (batch, head-group) with RoPE fused in VMEM.

    qkv_ref block: (N, 3*gw) bf16 laid out [q_group | k_group | v_group],
    q/k de-interleaved per head.  Output: (N, gw) bf16, lane-dense.
    """
    dh = head_dim
    half = dh // 2
    gw = hpg * dh
    cos = cos_ref[...]                                   # (N, Dh) f32
    sin = sin_ref[...]                                   # signed sin, (N, Dh)

    def rope(t):                                         # t: (N, Dh) f32
        sw = jnp.concatenate([t[:, half:], t[:, :half]], axis=1)
        return t * cos + sw * sin

    trans_b = (((1,), (1,)), ((), ()))
    outs = []
    for hh in range(hpg):                                # static, small (1-2)
        q = qkv_ref[:, hh * dh:(hh + 1) * dh].astype(jnp.float32)
        k = qkv_ref[:, gw + hh * dh: gw + (hh + 1) * dh].astype(jnp.float32)
        v = qkv_ref[:, 2 * gw + hh * dh: 2 * gw + (hh + 1) * dh]   # bf16
        q = (rope(q) * scale).astype(jnp.bfloat16)       # scale folded into q
        k = rope(k).astype(jnp.bfloat16)
        s = lax.dot_general(q, k, trans_b, preferred_element_type=jnp.float32)
        s = s - jnp.max(s, axis=-1, keepdims=True)
        p = jnp.exp(s)
        p = p * pl.reciprocal(jnp.sum(p, axis=-1, keepdims=True), approx=True)
        outs.append(jnp.dot(p.astype(jnp.bfloat16), v,
                            preferred_element_type=jnp.float32))
    if hpg == 1:
        o_ref[...] = outs[0].astype(o_ref.dtype)
    else:
        o_ref[...] = jnp.concatenate(outs, axis=-1).astype(o_ref.dtype)


# ---------------------------------------------------------------------------
# pallas_call wrappers
# ---------------------------------------------------------------------------

def _ln_linear(x2d, gamma, beta, w, bias, *, eps, tr, out_dtype=jnp.bfloat16):
    rows, c_in = x2d.shape
    c_out = w.shape[1]
    tn = _col_tile(c_out)
    return pl.pallas_call(
        functools.partial(_ln_linear_kernel, eps=eps),
        out_shape=jax.ShapeDtypeStruct((rows, c_out), out_dtype),
        grid_spec=pltpu.PrefetchScalarGridSpec(
            num_scalar_prefetch=0,
            grid=(rows // tr, c_out // tn),
            in_specs=[
                pl.BlockSpec((tr, c_in), lambda i, j: (i, 0)),
                pl.BlockSpec((1, c_in), lambda i, j: (0, 0)),
                pl.BlockSpec((1, c_in), lambda i, j: (0, 0)),
                pl.BlockSpec((c_in, tn), lambda i, j: (0, j)),
                pl.BlockSpec((1, tn), lambda i, j: (0, j)),
            ],
            out_specs=pl.BlockSpec((tr, tn), lambda i, j: (i, j)),
        ),
        compiler_params=_compiler_params("parallel", "parallel"),
    )(x2d, gamma, beta, w, bias)


def _ln_swiglu(x2d, gamma, beta, w1, b1, w2, b2, *, eps, tr):
    rows, c_in = x2d.shape
    hf = w1.shape[1]
    tn = _col_tile(hf)
    return pl.pallas_call(
        functools.partial(_ln_swiglu_kernel, eps=eps),
        out_shape=jax.ShapeDtypeStruct((rows, hf), jnp.bfloat16),
        grid_spec=pltpu.PrefetchScalarGridSpec(
            num_scalar_prefetch=0,
            grid=(rows // tr, hf // tn),
            in_specs=[
                pl.BlockSpec((tr, c_in), lambda i, j: (i, 0)),
                pl.BlockSpec((1, c_in), lambda i, j: (0, 0)),
                pl.BlockSpec((1, c_in), lambda i, j: (0, 0)),
                pl.BlockSpec((c_in, tn), lambda i, j: (0, j)),
                pl.BlockSpec((1, tn), lambda i, j: (0, j)),
                pl.BlockSpec((c_in, tn), lambda i, j: (0, j)),
                pl.BlockSpec((1, tn), lambda i, j: (0, j)),
            ],
            out_specs=pl.BlockSpec((tr, tn), lambda i, j: (i, j)),
        ),
        compiler_params=_compiler_params("parallel", "parallel"),
    )(x2d, gamma, beta, w1, b1, w2, b2)


def _linear_residual(y2d, w, bias, resid, *, tr, out_dtype):
    rows, c_in = y2d.shape
    c_out = w.shape[1]
    return pl.pallas_call(
        _linear_residual_kernel,
        out_shape=jax.ShapeDtypeStruct((rows, c_out), out_dtype),
        grid_spec=pltpu.PrefetchScalarGridSpec(
            num_scalar_prefetch=0,
            grid=(rows // tr,),
            in_specs=[
                pl.BlockSpec((tr, c_in), lambda i: (i, 0)),
                pl.BlockSpec((c_in, c_out), lambda i: (0, 0)),
                pl.BlockSpec((1, c_out), lambda i: (0, 0)),
                pl.BlockSpec((tr, c_out), lambda i: (i, 0)),
            ],
            out_specs=pl.BlockSpec((tr, c_out), lambda i: (i, 0)),
        ),
        compiler_params=_compiler_params("parallel"),
    )(y2d, w, bias, resid)


def _attention_with_rope(qkv, cos_d, sin_d, *, num_heads, head_dim, hpg, scale):
    b, n, c3 = qkv.shape
    c = c3 // 3
    gw = hpg * head_dim
    num_groups = num_heads // hpg
    return pl.pallas_call(
        functools.partial(_attn_rope_kernel, hpg=hpg, head_dim=head_dim, scale=scale),
        out_shape=jax.ShapeDtypeStruct((b, n, c), jnp.bfloat16),
        grid_spec=pltpu.PrefetchScalarGridSpec(
            num_scalar_prefetch=0,
            grid=(b, num_groups),
            in_specs=[
                pl.BlockSpec((None, n, 3 * gw), lambda i, g: (i, 0, g)),
                pl.BlockSpec((n, head_dim), lambda i, g: (0, 0)),
                pl.BlockSpec((n, head_dim), lambda i, g: (0, 0)),
            ],
            out_specs=pl.BlockSpec((None, n, gw), lambda i, g: (i, 0, g)),
        ),
        compiler_params=_compiler_params("parallel", "parallel"),
    )(qkv, cos_d, sin_d)


# ---------------------------------------------------------------------------
# Full block forward
# ---------------------------------------------------------------------------

def eva02_transformer_block(x, params, *, num_heads, num_extra_tokens,
                            image_size=224, patch_size=16, theta=10000.0, eps=1e-5):
    b, n, c = x.shape
    assert c % num_heads == 0
    dh = c // num_heads
    assert dh % 2 == 0
    seq_len = (image_size // patch_size) ** 2
    assert n == num_extra_tokens + seq_len, "token count must match extra + rope seq_len"
    scale = dh ** -0.5
    hpg = _heads_per_group(num_heads, dh)

    # Host-side parameter prep: bf16 weights, permuted qkv columns, f32 biases.
    perm = _qkv_col_perm(c, num_heads, dh, hpg)
    qkv_w = params["qkv_w"][:, perm].astype(jnp.bfloat16)
    qkv_b = params["qkv_b"][:, perm].astype(jnp.float32)
    proj_w = params["proj_w"].astype(jnp.bfloat16)
    fc1_w1 = params["fc1_w1"].astype(jnp.bfloat16)
    fc1_w2 = params["fc1_w2"].astype(jnp.bfloat16)
    fc2_w = params["fc2_w"].astype(jnp.bfloat16)

    cos_d, sin_d = _build_rope_tables(dh, num_extra_tokens, image_size, patch_size, theta)

    rows = b * n
    tr, padded_rows = _row_tiling(rows)
    x2d = x.reshape(rows, c).astype(jnp.float32)
    x2d_p = x2d if padded_rows == rows else jnp.pad(x2d, ((0, padded_rows - rows), (0, 0)))

    # 1) norm1 + qkv projection (bf16 output in head-group / de-interleaved order)
    qkv = _ln_linear(x2d_p, params["norm1_w"], params["norm1_b"], qkv_w, qkv_b,
                     eps=eps, tr=tr)
    # 2) attention with RoPE fused onto q/k while the group slab is in VMEM
    attn = _attention_with_rope(qkv[:rows].reshape(b, n, 3 * c), cos_d, sin_d,
                                num_heads=num_heads, head_dim=dh, hpg=hpg, scale=scale)
    attn2d = attn.reshape(rows, c)
    if padded_rows != rows:
        attn2d = jnp.pad(attn2d, ((0, padded_rows - rows), (0, 0)))
    # 3) output projection + first residual (f32 residual stream)
    #    TODO(synk): optionally fuse proj+residual into the attention call with a
    #    per-group accumulator to save one (rows, C) HBM round trip.
    x1 = _linear_residual(attn2d, proj_w, params["proj_b"], x2d_p,
                          tr=tr, out_dtype=jnp.float32)
    # 4) norm2 + SwiGLU fc1 + silu gate (bf16 hidden)
    h = _ln_swiglu(x1, params["norm2_w"], params["norm2_b"],
                   fc1_w1, params["fc1_b1"], fc1_w2, params["fc1_b2"],
                   eps=eps, tr=tr)
    # 5) fc2 + second residual
    out = _linear_residual(h, fc2_w, params["fc2_b"], x1, tr=tr, out_dtype=x.dtype)
    return out[:rows].reshape(b, n, c)


# ---------------------------------------------------------------------------
# Pure-JAX reference (transliteration of the PyTorch forward, f32)
# ---------------------------------------------------------------------------

def _reference_block(x, params, *, num_heads, num_extra_tokens,
                     image_size, patch_size, theta=10000.0, eps=1e-5):
    b, n, c = x.shape
    dh = c // num_heads
    e = num_extra_tokens
    scale = dh ** -0.5
    cos, sin = _build_freqs(dh, image_size, patch_size, theta)

    def layernorm(v, wgt, bias):
        mean = v.mean(-1, keepdims=True)
        var = ((v - mean) ** 2).mean(-1, keepdims=True)
        return (v - mean) / jnp.sqrt(var + eps) * (1.0 + wgt) + bias

    def rotate_half(t):
        tp = t.reshape(*t.shape[:-1], -1, 2)
        t1, t2 = tp[..., 0], tp[..., 1]
        return jnp.stack([-t2, t1], axis=-1).reshape(t.shape)

    h = layernorm(x, params["norm1_w"], params["norm1_b"])
    qkv = h @ params["qkv_w"] + params["qkv_b"]
    qkv = qkv.reshape(b, n, 3, num_heads, dh).transpose(2, 0, 3, 1, 4)
    q, k, v = qkv[0], qkv[1], qkv[2]

    def rope(t):
        return t * cos + rotate_half(t) * sin

    q = jnp.concatenate([q[:, :, :e], rope(q[:, :, e:])], axis=2)
    k = jnp.concatenate([k[:, :, :e], rope(k[:, :, e:])], axis=2)

    s = jnp.einsum("bhqd,bhkd->bhqk", q, k) * scale
    s = s - s.max(axis=-1, keepdims=True)
    p = jnp.exp(s)
    p = p / p.sum(axis=-1, keepdims=True)
    o = jnp.einsum("bhqk,bhkd->bhqd", p, v)
    o = o.transpose(0, 2, 1, 3).reshape(b, n, c)
    x1 = x + (o @ params["proj_w"] + params["proj_b"])

    h2 = layernorm(x1, params["norm2_w"], params["norm2_b"])
    y1 = h2 @ params["fc1_w1"] + params["fc1_b1"]
    y2 = h2 @ params["fc1_w2"] + params["fc1_b2"]
    y = y1 * jax.nn.sigmoid(y1) * y2
    return x1 + (y @ params["fc2_w"] + params["fc2_b"])


# ---------------------------------------------------------------------------
# Test
# ---------------------------------------------------------------------------

if __name__ == "__main__":
    # Small, self-consistent shapes:
    #   image_size=64, patch_size=16 -> rope seq_len = 16
    #   num_extra_tokens=16          -> N = 32 tokens
    #   dim=128, num_heads=2         -> head_dim = 64 (even, heads pair to 128 lanes)
    #   mlp_dim=128, batch=2
    dim, num_heads, mlp_dim = 128, 2, 128
    image_size, patch_size, theta = 64, 16, 10000.0
    num_extra_tokens = 16
    batch = 2
    n_tokens = num_extra_tokens + (image_size // patch_size) ** 2

    key = jax.random.PRNGKey(0)
    ks = jax.random.split(key, 16)
    x = jax.random.normal(ks[0], (batch, n_tokens, dim), dtype=jnp.float32)

    def wgt(k, shape, s):
        return (s * jax.random.normal(k, shape)).astype(jnp.float32)

    params = {
        "norm1_w": wgt(ks[1], (1, dim), 0.2),
        "norm1_b": wgt(ks[2], (1, dim), 0.2),
        "qkv_w":   wgt(ks[3], (dim, 3 * dim), 0.08),
        "qkv_b":   wgt(ks[4], (1, 3 * dim), 0.08),
        "proj_w":  wgt(ks[5], (dim, dim), 0.08),
        "proj_b":  wgt(ks[6], (1, dim), 0.08),
        "norm2_w": wgt(ks[7], (1, dim), 0.2),
        "norm2_b": wgt(ks[8], (1, dim), 0.2),
        "fc1_w1":  wgt(ks[9], (dim, mlp_dim), 0.08),   # fc1 chunk 1 (value path)
        "fc1_b1":  wgt(ks[10], (1, mlp_dim), 0.08),
        "fc1_w2":  wgt(ks[11], (dim, mlp_dim), 0.08),  # fc1 chunk 2 (gate path)
        "fc1_b2":  wgt(ks[12], (1, mlp_dim), 0.08),
        "fc2_w":   wgt(ks[13], (mlp_dim, dim), 0.08),
        "fc2_b":   wgt(ks[14], (1, dim), 0.08),
    }

    out = eva02_transformer_block(
        x, params, num_heads=num_heads, num_extra_tokens=num_extra_tokens,
        image_size=image_size, patch_size=patch_size, theta=theta)
    out = jax.block_until_ready(out)

    ref = _reference_block(
        x, params, num_heads=num_heads, num_extra_tokens=num_extra_tokens,
        image_size=image_size, patch_size=patch_size, theta=theta)

    assert out.shape == ref.shape and out.dtype == ref.dtype
    # bf16 MXU operands + bf16 inter-kernel activations vs. f32 reference.
    assert jnp.allclose(out, ref, atol=8e-2, rtol=8e-2), "mismatch vs reference"
    print("KERNEL_OK")
</pallas_src>

<mosaic_0001>
module attributes {stable_mosaic.version = 11 : i64} {
  func.func @_ln_linear_kernel(%arg0: i32, %arg1: i32, %arg2: memref<64x128xf32, #tpu.memory_space<vmem>>, %arg3: memref<1x128xf32, #tpu.memory_space<vmem>>, %arg4: memref<1x128xf32, #tpu.memory_space<vmem>>, %arg5: memref<128x128xbf16, #tpu.memory_space<vmem>>, %arg6: memref<1x128xf32, #tpu.memory_space<vmem>>, %arg7: memref<64x128xbf16, #tpu.memory_space<vmem>>) attributes {dimension_semantics = [#tpu.dimension_semantics<parallel>, #tpu.dimension_semantics<parallel>], iteration_bounds = array<i64: 1, 3>, scalar_prefetch = 0 : i64, scratch_operands = 0 : i64, tpu.core_type = #tpu.core_type<tc>, window_params = [{transform_indices = @transform_0, window_bounds = array<i64: 64, 128>}, {pipeline_mode = #tpu.pipeline_mode<synchronous>, transform_indices = @transform_1, window_bounds = array<i64: 1, 128>}, {pipeline_mode = #tpu.pipeline_mode<synchronous>, transform_indices = @transform_2, window_bounds = array<i64: 1, 128>}, {transform_indices = @transform_3, window_bounds = array<i64: 128, 128>}, {transform_indices = @transform_4, window_bounds = array<i64: 1, 128>}, {transform_indices = @transform_5, window_bounds = array<i64: 64, 128>}]} {
    %c0 = arith.constant 0 : index
    %c0_0 = arith.constant 0 : index
    %0 = vector.load %arg2[%c0, %c0_0] : memref<64x128xf32, #tpu.memory_space<vmem>>, vector<64x128xf32>
    %cst = arith.constant dense<0.000000e+00> : vector<64xf32>
    %1 = vector.multi_reduction <add>, %0, %cst [1] : vector<64x128xf32> to vector<64xf32>
    %2 = vector.shape_cast %1 : vector<64xf32> to vector<64x1xf32>
    %cst_1 = arith.constant 1.280000e+02 : f32
    %3 = vector.broadcast %cst_1 : f32 to vector<64x1xf32>
    %4 = arith.divf %2, %3 : vector<64x1xf32>
    %5 = vector.broadcast %4 : vector<64x1xf32> to vector<64x128xf32>
    %6 = arith.subf %0, %5 : vector<64x128xf32>
    %7 = arith.mulf %6, %6 : vector<64x128xf32>
    %cst_2 = arith.constant dense<0.000000e+00> : vector<64xf32>
    %8 = vector.multi_reduction <add>, %7, %cst_2 [1] : vector<64x128xf32> to vector<64xf32>
    %9 = vector.shape_cast %8 : vector<64xf32> to vector<64x1xf32>
    %cst_3 = arith.constant 1.280000e+02 : f32
    %10 = vector.broadcast %cst_3 : f32 to vector<64x1xf32>
    %11 = arith.divf %9, %10 : vector<64x1xf32>
    %12 = vector.broadcast %4 : vector<64x1xf32> to vector<64x128xf32>
    %13 = arith.subf %0, %12 : vector<64x128xf32>
    %cst_4 = arith.constant 9.99999974E-6 : f32
    %14 = vector.broadcast %cst_4 : f32 to vector<64x1xf32>
    %15 = arith.addf %11, %14 : vector<64x1xf32>
    %16 = math.rsqrt %15 : vector<64x1xf32>
    %17 = vector.broadcast %16 : vector<64x1xf32> to vector<64x128xf32>
    %18 = arith.mulf %13, %17 : vector<64x128xf32>
    %c0_5 = arith.constant 0 : index
    %c0_6 = arith.constant 0 : index
    %19 = vector.load %arg3[%c0_5, %c0_6] : memref<1x128xf32, #tpu.memory_space<vmem>>, vector<1x128xf32>
    %cst_7 = arith.constant 1.000000e+00 : f32
    %20 = vector.broadcast %cst_7 : f32 to vector<1x128xf32>
    %21 = arith.addf %20, %19 : vector<1x128xf32>
    %22 = vector.broadcast %21 : vector<1x128xf32> to vector<64x128xf32>
    %23 = arith.mulf %18, %22 : vector<64x128xf32>
    %c0_8 = arith.constant 0 : index
    %c0_9 = arith.constant 0 : index
    %24 = vector.load %arg4[%c0_8, %c0_9] : memref<1x128xf32, #tpu.memory_space<vmem>>, vector<1x128xf32>
    %25 = vector.broadcast %24 : vector<1x128xf32> to vector<64x128xf32>
    %26 = arith.addf %23, %25 : vector<64x128xf32>
    %27 = arith.truncf %26 : vector<64x128xf32> to vector<64x128xbf16>
    %c0_10 = arith.constant 0 : index
    %c0_11 = arith.constant 0 : index
    %28 = vector.load %arg5[%c0_10, %c0_11] : memref<128x128xbf16, #tpu.memory_space<vmem>>, vector<128x128xbf16>
    %cst_12 = arith.constant dense<0.000000e+00> : vector<64x128xf32>
    %29 = tpu.matmul %27, %28, %cst_12 {dimension_numbers = #tpu.dot_dimension_numbers<[1], [0], [0], [1], [0, 0, 1, 1], [], []>} : vector<64x128xbf16>, vector<128x128xbf16>, vector<64x128xf32> -> vector<64x128xf32>
    %c0_13 = arith.constant 0 : index
    %c0_14 = arith.constant 0 : index
    %30 = vector.load %arg6[%c0_13, %c0_14] : memref<1x128xf32, #tpu.memory_space<vmem>>, vector<1x128xf32>
    %31 = vector.broadcast %30 : vector<1x128xf32> to vector<64x128xf32>
    %32 = arith.addf %29, %31 : vector<64x128xf32>
    %33 = arith.truncf %32 : vector<64x128xf32> to vector<64x128xbf16>
    %c0_15 = arith.constant 0 : index
    %c0_16 = arith.constant 0 : index
    %34 = vector.load %arg7[%c0_15, %c0_16] : memref<64x128xbf16, #tpu.memory_space<vmem>>, vector<64x128xbf16>
    tpu.vector_store %arg7[%c0_15, %c0_16], %33 {strides = array<i32>} : memref<64x128xbf16, #tpu.memory_space<vmem>>, vector<64x128xbf16>,
    return
  }
  func.func @transform_0(%arg0: i32, %arg1: i32) -> (i32, i32) {
    %c0_i32 = arith.constant 0 : i32
    %c0_i32_0 = arith.constant 0 : i32
    return %arg0, %c0_i32 : i32, i32
  }
  func.func @transform_1(%arg0: i32, %arg1: i32) -> (i32, i32) {
    %c0_i32 = arith.constant 0 : i32
    %c0_i32_0 = arith.constant 0 : i32
    %c0_i32_1 = arith.constant 0 : i32
    return %c0_i32, %c0_i32_0 : i32, i32
  }
  func.func @transform_2(%arg0: i32, %arg1: i32) -> (i32, i32) {
    %c0_i32 = arith.constant 0 : i32
    %c0_i32_0 = arith.constant 0 : i32
    %c0_i32_1 = arith.constant 0 : i32
    return %c0_i32, %c0_i32_0 : i32, i32
  }
  func.func @transform_3(%arg0: i32, %arg1: i32) -> (i32, i32) {
    %c0_i32 = arith.constant 0 : i32
    %c0_i32_0 = arith.constant 0 : i32
    return %c0_i32, %arg1 : i32, i32
  }
  func.func @transform_4(%arg0: i32, %arg1: i32) -> (i32, i32) {
    %c0_i32 = arith.constant 0 : i32
    %c0_i32_0 = arith.constant 0 : i32
    return %c0_i32, %arg1 : i32, i32
  }
  func.func @transform_5(%arg0: i32, %arg1: i32) -> (i32, i32) {
    %c0_i32 = arith.constant 0 : i32
    return %arg0, %arg1 : i32, i32
  }
}

</mosaic_0001>

<llo_original>
// kernel: tpu_custom_call.1
$region0: #{tpu_custom_call.1}
  #allocation0 [shape = 'u32[]', space=smem, size = 0x4, offset = 0x4, fixed_abs, tag = 'smem constant byte address 0x4 - core index']
  #allocation1 [shape = 'u32[144,128]{1,0:T(1,128)}', space=vmem, size = 0x12000, scoped, tag = 'internal scratch']
  %s0 = inlined_call_operand.hbm [shape: f32[64,128], index: 0, kind: input, shape index: {}]
  %s1 = inlined_call_operand.hbm [shape: f32[1,128], index: 1, kind: input, shape index: {}]
  %s2 = inlined_call_operand.hbm [shape: f32[1,128], index: 2, kind: input, shape index: {}]
  %s3 = inlined_call_operand.hbm [shape: bf16[128,384], index: 3, kind: input, shape index: {}]
  %s4 = inlined_call_operand.hbm [shape: f32[1,384], index: 4, kind: input, shape index: {}]
  %s5 = inlined_call_operand.hbm [shape: bf16[64,384], index: 5, kind: output, shape index: {}]
  %s6 = sld [smem:[#allocation0]]
  $region73: #{tpu_custom_call.1} parent=0
    _
  %s8 = ssub.s32 1, %s6
  %s9 = scalar_select 0, %s8, %s6
  $region1: #{tpu_custom_call.1} parent=0
    #allocation2 [shape = 'u8[32768]{0}', space=vmem, size = 0x8000, scoped, tag = 'input window, operand 0, single buffered']
    #allocation3 [shape = 's32[2]{0}', space=sflag, size = 0x8, scoped, tag = 'scoped memory for tpu_custom_call.1']
    #allocation4 [shape = 's32[2]{0}', space=sflag, size = 0x8, scoped, tag = 'scoped memory for tpu_custom_call.1']
    #allocation5 [shape = 'u8[512]{0}', space=vmem, size = 0x400, scoped, tag = 'input window, operand 1, single buffered']
    #allocation6 [shape = 's32[1]{0}', space=sflag, size = 0x4, scoped, tag = 'scoped memory for tpu_custom_call.1']
    #allocation7 [shape = 'u8[512]{0}', space=vmem, size = 0x400, scoped, tag = 'input window, operand 2, single buffered']
    #allocation8 [shape = 'u8[65536]{0}', space=vmem, size = 0x10000, scoped, tag = 'input window, operand 3']
    #allocation9 [shape = 's32[2]{0}', space=sflag, size = 0x8, scoped, tag = 'scoped memory for tpu_custom_call.1']
    #allocation10 [shape = 'u8[1024]{0}', space=vmem, size = 0x400, scoped, tag = 'input window, operand 4']
    #allocation11 [shape = 'u8[32768]{0}', space=vmem, size = 0x8000, scoped, tag = 'output window, operand 0']
    %10 = vsyncpa [#allocation3], 0
    %11 = vsyncpa [#allocation6], 0
    %12 = vsyncpa [#allocation9], 0
    %s13 = scalar_lea.sflag [#allocation9], 1
    %14 = vsyncpa %s13, 0
    %15 = vsyncpa [#allocation4], 0
    %s16 = scalar_lea.sflag [#allocation4], 1
    %17 = vsyncpa %s16, 0
    loop: start=0, step=1, limit=5
    $region2: #{tpu_custom_call.1} parent=1 // loop_pre_header
      _
    $region3: #{tpu_custom_call.1} parent=1 // loop_header
      %s19 = sphi 0, %s23
      %p20 = scmp.ge.s32.totalorder %s19, 5
      %s26 = sphi 0, %s38
      %s27 = sphi 0, %s34
      %s28 = sphi 0, %s26
      %s29 = sphi 0, %s27
      %s30 = sphi 0, %s28
      %s31 = sphi 0, %s29
      %s41 = sphi 0, %s43
      %s44 = sphi 0, %s41
      %s45 = sphi 0, %s44
      %s61 = sphi 0, %s45
      %s65 = sphi 0, %s65
      %s67 = sphi 0, %s65
      %s68 = sphi 0, %s67
      %s82 = sphi 0, %s68
      %s86 = sphi 0, %s86
      %s88 = sphi 0, %s86
      %s89 = sphi 0, %s88
      %s103 = sphi 0, %s89
      %s109 = sphi 0, %s111
      %s112 = sphi 0, %s109
      %s113 = sphi 0, %s112
      %s129 = sphi 0, %s113
      %s135 = sphi 0, %s137
      %s138 = sphi 0, %s135
      %s139 = sphi 0, %s138
      %s155 = sphi 0, %s139
      %s163 = sphi 0, %s165
      %s166 = sphi 0, %s163
      %s167 = sphi 0, %s166
      %s183 = sphi 0, %s167
    $region4: #{tpu_custom_call.1} parent=1 // loop_header_branch
      %22 = sbr.rel (%p20) target = $region8
    $region5: #{tpu_custom_call.1} parent=1 // loop_body
      %s24 = ssub.s32 %s19, 1
      %s25 = ssub.s32 %s19, 2
      %s32 = sadd.s32 1, %s27
      %p33 = scmp.ge.s32.totalorder %s32, 3
      %s34 = scalar_select %p33, 0, %s32
      %s35 = sadd.s32 1, %s26
      %s36 = scalar_select %p33, %s35, %s26
      %p37 = scmp.ge.s32.totalorder %s36, 1
      %s38 = scalar_select %p37, 0, %s36
      %s39 = ssub.s32 %s26, %s38
      %p40 = scmp.eq.s32.totalorder %s39, 0
      %s42 = sadd.s32 %s41, 1
      %s43 = scalar_select %p40, %s41, %s42
      %p46 = pneg %p40
      %p47 = scmp.eq.s32.totalorder %s19, 2
      %p48 = por %p46, %p47
      %p49 = scmp.ne.s32.totalorder %s41, %s44
      %p50 = scmp.eq.s32.totalorder %s19, 0
      %p51 = por %p49, %p50
      %p52 = scmp.ne.s32.totalorder %s41, %s44
      %p53 = scmp.eq.s32.totalorder %s24, 2
      %p54 = por %p52, %p53
      %p55 = scmp.ne.s32.totalorder %s44, %s45
      %p56 = scmp.eq.s32.totalorder %s24, 0
      %p57 = por %p55, %p56
      %p58 = scmp.ne.s32.totalorder %s44, %s45
      %p59 = scmp.eq.s32.totalorder %s25, 2
      %p60 = por %p58, %p59
      %p62 = scmp.ne.s32.totalorder %s45, %s61
      %p63 = scmp.eq.s32.totalorder %s25, 0
      %p64 = por %p62, %p63
      %s66 = sadd.s32 %s65, 1
      %p69 = scmp.eq.s32.totalorder %s19, 2
      %p70 = scmp.ne.s32.totalorder %s65, %s67
      %p71 = scmp.eq.s32.totalorder %s19, 0
      %p72 = por %p70, %p71
      %p73 = scmp.ne.s32.totalorder %s65, %s67
      %p74 = scmp.eq.s32.totalorder %s24, 2
      %p75 = por %p73, %p74
      %p76 = scmp.ne.s32.totalorder %s67, %s68
      %p77 = scmp.eq.s32.totalorder %s24, 0
      %p78 = por %p76, %p77
      %p79 = scmp.ne.s32.totalorder %s67, %s68
      %p80 = scmp.eq.s32.totalorder %s25, 2
      %p81 = por %p79, %p80
      %p83 = scmp.ne.s32.totalorder %s68, %s82
      %p84 = scmp.eq.s32.totalorder %s25, 0
      %p85 = por %p83, %p84
      %s87 = sadd.s32 %s86, 1
      %p90 = scmp.eq.s32.totalorder %s19, 2
      %p91 = scmp.ne.s32.totalorder %s86, %s88
      %p92 = scmp.eq.s32.totalorder %s19, 0
      %p93 = por %p91, %p92
      %p94 = scmp.ne.s32.totalorder %s86, %s88
      %p95 = scmp.eq.s32.totalorder %s24, 2
      %p96 = por %p94, %p95
      %p97 = scmp.ne.s32.totalorder %s88, %s89
      %p98 = scmp.eq.s32.totalorder %s24, 0
      %p99 = por %p97, %p98
      %p100 = scmp.ne.s32.totalorder %s88, %s89
      %p101 = scmp.eq.s32.totalorder %s25, 2
      %p102 = por %p100, %p101
      %p104 = scmp.ne.s32.totalorder %s89, %s103
      %p105 = scmp.eq.s32.totalorder %s25, 0
      %p106 = por %p104, %p105
      %s107 = ssub.s32 %s27, %s34
      %p108 = scmp.eq.s32.totalorder %s107, 0
      %s110 = sadd.s32 %s109, 1
      %s111 = scalar_select %p108, %s109, %s110
      %p114 = pneg %p108
      %p115 = scmp.eq.s32.totalorder %s19, 2
      %p116 = por %p114, %p115
      %p117 = scmp.ne.s32.totalorder %s109, %s112
      %p118 = scmp.eq.s32.totalorder %s19, 0
      %p119 = por %p117, %p118
      %p120 = scmp.ne.s32.totalorder %s109, %s112
      %p121 = scmp.eq.s32.totalorder %s24, 2
      %p122 = por %p120, %p121
      %p123 = scmp.ne.s32.totalorder %s112, %s113
      %p124 = scmp.eq.s32.totalorder %s24, 0
      %p125 = por %p123, %p124
      %p126 = scmp.ne.s32.totalorder %s112, %s113
      %p127 = scmp.eq.s32.totalorder %s25, 2
      %p128 = por %p126, %p127
      %p130 = scmp.ne.s32.totalorder %s113, %s129
      %p131 = scmp.eq.s32.totalorder %s25, 0
      %p132 = por %p130, %p131
      %s133 = ssub.s32 %s27, %s34
      %p134 = scmp.eq.s32.totalorder %s133, 0
      %s136 = sadd.s32 %s135, 1
      %s137 = scalar_select %p134, %s135, %s136
      %p140 = pneg %p134
      %p141 = scmp.eq.s32.totalorder %s19, 2
      %p142 = por %p140, %p141
      %p143 = scmp.ne.s32.totalorder %s135, %s138
      %p144 = scmp.eq.s32.totalorder %s19, 0
      %p145 = por %p143, %p144
      %p146 = scmp.ne.s32.totalorder %s135, %s138
      %p147 = scmp.eq.s32.totalorder %s24, 2
      %p148 = por %p146, %p147
      %p149 = scmp.ne.s32.totalorder %s138, %s139
      %p150 = scmp.eq.s32.totalorder %s24, 0
      %p151 = por %p149, %p150
      %p152 = scmp.ne.s32.totalorder %s138, %s139
      %p153 = scmp.eq.s32.totalorder %s25, 2
      %p154 = por %p152, %p153
      %p156 = scmp.ne.s32.totalorder %s139, %s155
      %p157 = scmp.eq.s32.totalorder %s25, 0
      %p158 = por %p156, %p157
      %s159 = ssub.s32 %s26, %s38
      %s160 = ssub.s32 %s27, %s34
      %s161 = sor.u32 %s159, %s160
      %p162 = scmp.eq.s32.totalorder %s161, 0
      %s164 = sadd.s32 %s163, 1
      %s165 = scalar_select %p162, %s163, %s164
      %p168 = pneg %p162
      %p169 = scmp.eq.s32.totalorder %s19, 2
      %p170 = por %p168, %p169
      %p171 = scmp.ne.s32.totalorder %s163, %s166
      %p172 = scmp.eq.s32.totalorder %s19, 0
      %p173 = por %p171, %p172
      %p174 = scmp.ne.s32.totalorder %s163, %s166
      %p175 = scmp.eq.s32.totalorder %s24, 2
      %p176 = por %p174, %p175
      %p177 = scmp.ne.s32.totalorder %s166, %s167
      %p178 = scmp.eq.s32.totalorder %s24, 0
      %p179 = por %p177, %p178
      %p180 = scmp.ne.s32.totalorder %s166, %s167
      %p181 = scmp.eq.s32.totalorder %s25, 2
      %p182 = por %p180, %p181
      %p184 = scmp.ne.s32.totalorder %s167, %s183
      %p185 = scmp.eq.s32.totalorder %s25, 0
      %p186 = por %p184, %p185
      %p187 = scmp.le.s32.totalorder 1, %s19
      %p188 = scmp.lt.s32.totalorder %s19, 4
      %p189 = pnand %p187, %p188
      %p190 = pneg %p189
      // Predicated region
      $region9: #{tpu_custom_call.1} parent=5 // pred_check
        _
      $region10: #{tpu_custom_call.1} parent=5 // pred_check_branch
        %192 = sbr.rel (%p189) target = $region12
      $region11: #{tpu_custom_call.1} parent=5 // pred_region
        %s193 = ssub.s32 %s19, 1
        // Predicated region
        $region13: #{tpu_custom_call.1} parent=11 // pred_check
          %p194 = pneg %p57
        $region14: #{tpu_custom_call.1} parent=11 // pred_check_branch
          %196 = sbr.rel (%p194) target = $region16
        $region15: #{tpu_custom_call.1} parent=11 // pred_region
          %s197 = smul.u32 8, %s28
          %s199 = ssub.s32 1024, 1024
          %200 = vsyncadd [#allocation3], %s199
          %s201 = smul.addr %s197, 128
          %s202 = scalar_lea.hbm %s0, %s201
          %s203 = sshll.u32 [#allocation2], 4
          %s204 = int_to_ptr.vmem [resolvable:$true] %s203
          %209 = dma.hbm_to_vmem [thread:$0]  %s202, 1024, %s204, [#allocation3], 128, 128, 8
        $region16: #{tpu_custom_call.1} parent=11 // pred_fallthru
          _
        // Predicated region
        $region17: #{tpu_custom_call.1} parent=11 // pred_check
          %p210 = pneg %p78
        $region18: #{tpu_custom_call.1} parent=11 // pred_check_branch
          %212 = sbr.rel (%p210) target = $region20
        $region19: #{tpu_custom_call.1} parent=11 // pred_region
          %s214 = ssub.s32 16, 16
          %215 = vsyncadd [#allocation6], %s214
          %s217 = sshll.u32 [#allocation5], 4
          %s218 = int_to_ptr.vmem [resolvable:$true] %s217
          %220 = dma.hbm_to_vmem [thread:$0]  %s1, 16, %s218, [#allocation6]
        $region20: #{tpu_custom_call.1} parent=11 // pred_fallthru
          _
        // Predicated region
        $region21: #{tpu_custom_call.1} parent=11 // pred_check
          %p221 = pneg %p99
        $region22: #{tpu_custom_call.1} parent=11 // pred_check_branch
          %223 = sbr.rel (%p221) target = $region24
        $region23: #{tpu_custom_call.1} parent=11 // pred_region
          %s225 = ssub.s32 16, 16
          %226 = vsyncadd [#allocation6], %s225
          %s228 = sshll.u32 [#allocation7], 4
          %s229 = int_to_ptr.vmem [resolvable:$true] %s228
          %231 = dma.hbm_to_vmem [thread:$0]  %s2, 16, %s229, [#allocation6]
        $region24: #{tpu_custom_call.1} parent=11 // pred_fallthru
          _
      $region12: #{tpu_custom_call.1} parent=5 // pred_fallthru
        _
      %p232 = scmp.lt.s32.totalorder %s19, 3
      // Predicated region
      $region25: #{tpu_custom_call.1} parent=5 // pred_check
        %p233 = pneg %p232
      $region26: #{tpu_custom_call.1} parent=5 // pred_check_branch
        %235 = sbr.rel (%p233) target = $region28
      $region27: #{tpu_custom_call.1} parent=5 // pred_region
        // Predicated region
        $region29: #{tpu_custom_call.1} parent=27 // pred_check
          %p236 = pneg %p119
        $region30: #{tpu_custom_call.1} parent=27 // pred_check_branch
          %238 = sbr.rel (%p236) target = $region32
        $region31: #{tpu_custom_call.1} parent=27 // pred_region
          %s239 = sand.u32 %s19, 1
          %s240 = scalar_lea.sflag [#allocation9], %s239
          %s241 = sand.u32 %s109, 1
          %s242 = smul.addr %s241, 64
          %s243 = scalar_lea.vmem [#allocation8], %s242
          %s245 = ssub.s32 1024, 1024
          %246 = vsyncadd %s240, %s245
          %s247 = smul.addr %s27, 64
          %s248 = scalar_lea.hbm %s3, %s247
          %s249 = sshll.u32 %s243, 4
          %s250 = int_to_ptr.vmem [resolvable:$true] %s249
          %255 = dma.hbm_to_vmem [thread:$0]  %s248, 1024, %s250, %s240, 192, 64, 4
        $region32: #{tpu_custom_call.1} parent=27 // pred_fallthru
          _
        // Predicated region
        $region33: #{tpu_custom_call.1} parent=27 // pred_check
          %p256 = pneg %p145
        $region34: #{tpu_custom_call.1} parent=27 // pred_check_branch
          %258 = sbr.rel (%p256) target = $region36
        $region35: #{tpu_custom_call.1} parent=27 // pred_region
          %s259 = sand.u32 %s19, 1
          %s260 = scalar_lea.sflag [#allocation9], %s259
          %s261 = sand.u32 %s135, 1
          %s262 = scalar_lea.vmem [#allocation10], %s261
          %s264 = ssub.s32 16, 16
          %265 = vsyncadd %s260, %s264
          %s266 = smul.addr %s27, 16
          %s267 = scalar_lea.hbm %s4, %s266
          %s269 = sshll.u32 %s262, 4
          %s270 = int_to_ptr.vmem [resolvable:$true] %s269
          %272 = dma.hbm_to_vmem [thread:$0]  %s267, 16, %s270, %s260
        $region36: #{tpu_custom_call.1} parent=27 // pred_fallthru
          _
      $region28: #{tpu_custom_call.1} parent=5 // pred_fallthru
        _
      %p273 = scmp.le.s32.totalorder 1, %s19
      %p274 = scmp.lt.s32.totalorder %s19, 4
      %p275 = pnand %p273, %p274
      %p276 = pneg %p275
      // Predicated region
      $region37: #{tpu_custom_call.1} parent=5 // pred_check
        _
      $region38: #{tpu_custom_call.1} parent=5 // pred_check_branch
        %278 = sbr.rel (%p275) target = $region40
      $region39: #{tpu_custom_call.1} parent=5 // pred_region
        %s279 = ssub.s32 %s19, 1
        // Predicated region
        $region41: #{tpu_custom_call.1} parent=39 // pred_check
          %p280 = pneg %p57
        $region42: #{tpu_custom_call.1} parent=39 // pred_check_branch
          %282 = sbr.rel (%p280) target = $region44
        $region43: #{tpu_custom_call.1} parent=39 // pred_region
          %283 = dma.done [#allocation3], 1024
        $region44: #{tpu_custom_call.1} parent=39 // pred_fallthru
          _
        // Predicated region
        $region45: #{tpu_custom_call.1} parent=39 // pred_check
          %p284 = pneg %p78
        $region46: #{tpu_custom_call.1} parent=39 // pred_check_branch
          %286 = sbr.rel (%p284) target = $region48
        $region47: #{tpu_custom_call.1} parent=39 // pred_region
          %287 = dma.done [#allocation6], 16
        $region48: #{tpu_custom_call.1} parent=39 // pred_fallthru
          _
        // Predicated region
        $region49: #{tpu_custom_call.1} parent=39 // pred_check
          %p288 = pneg %p99
        $region50: #{tpu_custom_call.1} parent=39 // pred_check_branch
          %290 = sbr.rel (%p288) target = $region52
        $region51: #{tpu_custom_call.1} parent=39 // pred_region
          %291 = dma.done [#allocation6], 16
        $region52: #{tpu_custom_call.1} parent=39 // pred_fallthru
          _
        %s292 = sand.u32 %s24, 1
        %s293 = scalar_lea.sflag [#allocation9], %s292
        %s294 = sand.u32 %s112, 1
        %s295 = smul.addr %s294, 64
        %s296 = scalar_lea.vmem [#allocation8], %s295
        // Predicated region
        $region53: #{tpu_custom_call.1} parent=39 // pred_check
          %p297 = pneg %p125
        $region54: #{tpu_custom_call.1} parent=39 // pred_check_branch
          %299 = sbr.rel (%p297) target = $region56
        $region55: #{tpu_custom_call.1} parent=39 // pred_region
          %300 = dma.done %s293, 1024
        $region56: #{tpu_custom_call.1} parent=39 // pred_fallthru
          _
        %s301 = sand.u32 %s24, 1
        %s302 = scalar_lea.sflag [#allocation9], %s301
        %s303 = sand.u32 %s138, 1
        %s304 = scalar_lea.vmem [#allocation10], %s303
        // Predicated region
        $region57: #{tpu_custom_call.1} parent=39 // pred_check
          %p305 = pneg %p151
        $region58: #{tpu_custom_call.1} parent=39 // pred_check_branch
          %307 = sbr.rel (%p305) target = $region60
        $region59: #{tpu_custom_call.1} parent=39 // pred_region
          %308 = dma.done %s302, 16
        $region60: #{tpu_custom_call.1} parent=39 // pred_fallthru
          _
        %p309 = pneg %p57
        %p310 = pneg %p54
        %p311 = pneg %p78
        %p312 = pneg %p75
        %p313 = pneg %p99
        %p314 = pneg %p96
        %s315 = sand.u32 %s24, 1
        %s316 = scalar_lea.sflag [#allocation9], %s315
        %s317 = sand.u32 %s112, 1
        %s318 = smul.addr %s317, 64
        %s319 = scalar_lea.vmem [#allocation8], %s318
        %p320 = pneg %p125
        %p321 = pneg %p122
        %s322 = sand.u32 %s24, 1
        %s323 = scalar_lea.sflag [#allocation9], %s322
        %s324 = sand.u32 %s138, 1
        %s325 = scalar_lea.vmem [#allocation10], %s324
        %p326 = pneg %p151
        %p327 = pneg %p148
        %p328 = pneg %p179
        %p329 = pneg %p176
        %s330 = sand.u32 %s166, 1
        %s331 = scalar_lea.sflag [#allocation4], %s330
        %s332 = sand.u32 %s166, 1
        %s333 = smul.addr %s332, 32
        %s334 = scalar_lea.vmem [#allocation11], %s333
        %s335 = smul.u32 8, %s28
        %s336 = smul.u32 8, %s28
        %v338 = vld [vmem:[#allocation2] sm:$0xff]
        %v339 = vld [vmem:[#allocation2 + $0x8] sm:$0xff]
        %v340 = vld [vmem:[#allocation2 + $0x10] sm:$0xff]
        %v341 = vld [vmem:[#allocation2 + $0x18] sm:$0xff]
        %v342 = vld [vmem:[#allocation2 + $0x20] sm:$0xff]
        %v343 = vld [vmem:[#allocation2 + $0x28] sm:$0xff]
        %v344 = vld [vmem:[#allocation2 + $0x30] sm:$0xff]
        %v345 = vld [vmem:[#allocation2 + $0x38] sm:$0xff]
        %346 = vadd.xlane.f32.xlu0 %v338
        %v347 = vpop.xlane.xlu0 %346
        %348 = vadd.xlane.f32.xlu0 %v339
        %v349 = vpop.xlane.xlu0 %348
        %350 = vadd.xlane.f32.xlu0 %v340
        %v351 = vpop.xlane.xlu0 %350
        %352 = vadd.xlane.f32.xlu0 %v341
        %v353 = vpop.xlane.xlu0 %352
        %354 = vadd.xlane.f32.xlu0 %v342
        %v355 = vpop.xlane.xlu0 %354
        %356 = vadd.xlane.f32.xlu0 %v343
        %v357 = vpop.xlane.xlu0 %356
        %358 = vadd.xlane.f32.xlu0 %v344
        %v359 = vpop.xlane.xlu0 %358
        %360 = vadd.xlane.f32.xlu0 %v345
        %v361 = vpop.xlane.xlu0 %360
        %v362 = vrcp.pop 128.0
        %v363 = vmul.f32 %v347, %v362
        %v364 = vmul.f32 %v349, %v362
        %v365 = vmul.f32 %v351, %v362
        %v366 = vmul.f32 %v353, %v362
        %v367 = vmul.f32 %v355, %v362
        %v368 = vmul.f32 %v357, %v362
        %v369 = vmul.f32 %v359, %v362
        %v370 = vmul.f32 %v361, %v362
        %v371 = vsub.f32 %v338, %v363
        %v372 = vsub.f32 %v339, %v364
        %v373 = vsub.f32 %v340, %v365
        %v374 = vsub.f32 %v341, %v366
        %v375 = vsub.f32 %v342, %v367
        %v376 = vsub.f32 %v343, %v368
        %v377 = vsub.f32 %v344, %v369
        %v378 = vsub.f32 %v345, %v370
        %v379 = vmul.f32 %v371, %v371
        %v380 = vmul.f32 %v372, %v372
        %v381 = vmul.f32 %v373, %v373
        %v382 = vmul.f32 %v374, %v374
        %v383 = vmul.f32 %v375, %v375
        %v384 = vmul.f32 %v376, %v376
        %v385 = vmul.f32 %v377, %v377
        %v386 = vmul.f32 %v378, %v378
        %387 = vadd.xlane.f32.xlu0 %v379
        %v388 = vpop.xlane.xlu0 %387
        %389 = vadd.xlane.f32.xlu0 %v380
        %v390 = vpop.xlane.xlu0 %389
        %391 = vadd.xlane.f32.xlu0 %v381
        %v392 = vpop.xlane.xlu0 %391
        %393 = vadd.xlane.f32.xlu0 %v382
        %v394 = vpop.xlane.xlu0 %393
        %395 = vadd.xlane.f32.xlu0 %v383
        %v396 = vpop.xlane.xlu0 %395
        %397 = vadd.xlane.f32.xlu0 %v384
        %v398 = vpop.xlane.xlu0 %397
        %399 = vadd.xlane.f32.xlu0 %v385
        %v400 = vpop.xlane.xlu0 %399
        %401 = vadd.xlane.f32.xlu0 %v386
        %v402 = vpop.xlane.xlu0 %401
        %v403 = vmul.f32 %v388, %v362
        %v404 = vmul.f32 %v390, %v362
        %v405 = vmul.f32 %v392, %v362
        %v406 = vmul.f32 %v394, %v362
        %v407 = vmul.f32 %v396, %v362
        %v408 = vmul.f32 %v398, %v362
        %v409 = vmul.f32 %v400, %v362
        %v410 = vmul.f32 %v402, %v362
        %v411 = vadd.f32 %v403, 1e-05
        %v412 = vadd.f32 %v404, 1e-05
        %v413 = vadd.f32 %v405, 1e-05
        %v414 = vadd.f32 %v406, 1e-05
        %v415 = vadd.f32 %v407, 1e-05
        %v416 = vadd.f32 %v408, 1e-05
        %v417 = vadd.f32 %v409, 1e-05
        %v418 = vadd.f32 %v410, 1e-05
        %v419 = vrsqrt.pop %v411
        %v420 = vrsqrt.pop %v412
        %v421 = vrsqrt.pop %v413
        %v422 = vrsqrt.pop %v414
        %v423 = vrsqrt.pop %v415
        %v424 = vrsqrt.pop %v416
        %v425 = vrsqrt.pop %v417
        %v426 = vrsqrt.pop %v418
        %v427 = vmul.f32 %v371, %v419
        %v428 = vmul.f32 %v372, %v420
        %v429 = vmul.f32 %v373, %v421
        %v430 = vmul.f32 %v374, %v422
        %v431 = vmul.f32 %v375, %v423
        %v432 = vmul.f32 %v376, %v424
        %v433 = vmul.f32 %v377, %v425
        %v434 = vmul.f32 %v378, %v426
        %v435 = vld [vmem:[#allocation5] sm:$0x1]
        %v436 = vadd.f32 %v435, 1.0
        %v438 = vlaneseq
        %v439 = vshrl.u32 %v438, 7
        %v440 = vsub.s32 0, %v439
        %v441 = vrot.slane %v436, %v440
        %v443 = vmul.f32 %v427, %v441
        %v444 = vmul.f32 %v428, %v441
        %v445 = vmul.f32 %v429, %v441
        %v446 = vmul.f32 %v430, %v441
        %v447 = vmul.f32 %v431, %v441
        %v448 = vmul.f32 %v432, %v441
        %v449 = vmul.f32 %v433, %v441
        %v450 = vmul.f32 %v434, %v441
        %v451 = vld [vmem:[#allocation7] sm:$0x1]
        %v453 = vlaneseq
        %v454 = vshrl.u32 %v453, 7
        %v455 = vsub.s32 0, %v454
        %v456 = vrot.slane %v451, %v455
        %v458 = vadd.f32 %v443, %v456
        %v459 = vadd.f32 %v444, %v456
        %v460 = vadd.f32 %v445, %v456
        %v461 = vadd.f32 %v446, %v456
        %v462 = vadd.f32 %v447, %v456
        %v463 = vadd.f32 %v448, %v456
        %v464 = vadd.f32 %v449, %v456
        %v465 = vadd.f32 %v450, %v456
        %v466 = vpack.c.bf16 %v459, %v458
        %v467 = vpack.c.bf16 %v461, %v460
        %v468 = vpack.c.bf16 %v463, %v462
        %v469 = vpack.c.bf16 %v465, %v464
        %v470 = vld [vmem:[%s296] sm:$0xf]
        %v471 = vld [vmem:[%s296 + $0x4] sm:$0xf]
        %v472 = vld [vmem:[%s296 + $0x8] sm:$0xf]
        %v473 = vld [vmem:[%s296 + $0xc] sm:$0xf]
        %v474 = vld [vmem:[%s296 + $0x10] sm:$0xf]
        %v475 = vld [vmem:[%s296 + $0x14] sm:$0xf]
        %v476 = vld [vmem:[%s296 + $0x18] sm:$0xf]
        %v477 = vld [vmem:[%s296 + $0x1c] sm:$0xf]
        %v478 = vld [vmem:[%s296 + $0x20] sm:$0xf]
        %v479 = vld [vmem:[%s296 + $0x24] sm:$0xf]
        %v480 = vld [vmem:[%s296 + $0x28] sm:$0xf]
        %v481 = vld [vmem:[%s296 + $0x2c] sm:$0xf]
        %v482 = vld [vmem:[%s296 + $0x30] sm:$0xf]
        %v483 = vld [vmem:[%s296 + $0x34] sm:$0xf]
        %v484 = vld [vmem:[%s296 + $0x38] sm:$0xf]
        %v485 = vld [vmem:[%s296 + $0x3c] sm:$0xf]
        %v486 = vld [vmem:[%s304] sm:$0x1]
        %v488 = vlaneseq
        %v489 = vshrl.u32 %v488, 7
        %v490 = vsub.s32 0, %v489
        %v491 = vrot.slane %v486, %v490
        %v509 = vunpack.c.l.b16 %v470
        %v510 = vunpack.c.l.b16 %v471
        %v511 = vunpack.c.l.b16 %v472
        %v512 = vunpack.c.l.b16 %v473
        %v513 = vunpack.c.l.b16 %v474
        %v514 = vunpack.c.l.b16 %v475
        %v515 = vunpack.c.l.b16 %v476
        %v516 = vunpack.c.l.b16 %v477
        %v517 = vunpack.c.l.b16 %v478
        %v518 = vunpack.c.l.b16 %v479
        %v519 = vunpack.c.l.b16 %v480
        %v520 = vunpack.c.l.b16 %v481
        %v521 = vunpack.c.l.b16 %v482
        %v522 = vunpack.c.l.b16 %v483
        %v523 = vunpack.c.l.b16 %v484
        %v524 = vunpack.c.l.b16 %v485
        %v525 = vpack.c.b16 %v510, %v509
        %v526 = vpack.c.b16 %v512, %v511
        %v527 = vpack.c.b16 %v514, %v513
        %v528 = vpack.c.b16 %v516, %v515
        %v529 = vpack.c.b16 %v518, %v517
        %v530 = vpack.c.b16 %v520, %v519
        %v531 = vpack.c.b16 %v522, %v521
        %v532 = vpack.c.b16 %v524, %v523
        %541 = vmatprep.subr.bf16.mxu0 0
        %542 = vmatpush1.bf16.msra.mxu0 %v525
        %543 = vmatprep.subr.bf16.mxu0 0
        %544 = vmatpush1.bf16.msra.mxu0 %v526
        %545 = vmatprep.subr.bf16.mxu0 0
        %546 = vmatpush1.bf16.msra.mxu0 %v527
        %547 = vmatprep.subr.bf16.mxu0 0
        %548 = vmatpush1.bf16.msra.mxu0 %v528
        %549 = vmatprep.subr.bf16.mxu0 0
        %550 = vmatpush1.bf16.msra.mxu0 %v529
        %551 = vmatprep.subr.bf16.mxu0 0
        %552 = vmatpush1.bf16.msra.mxu0 %v530
        %553 = vmatprep.subr.bf16.mxu0 0
        %554 = vmatpush1.bf16.msra.mxu0 %v531
        %555 = vmatprep.subr.bf16.mxu0 0
        %556 = vmatpush1.bf16.msra.mxu0 %v532
        %557 = vmatprep.subr.bf16.mxu0 0
        %558 = vmatpush1.bf16.msra.mxu0 0
        %559 = vmatprep.subr.bf16.mxu0 0
        %560 = vmatpush1.bf16.msra.mxu0 0
        %561 = vmatprep.subr.bf16.mxu0 0
        %562 = vmatpush1.bf16.msra.mxu0 0
        %563 = vmatprep.subr.bf16.mxu0 0
        %564 = vmatpush1.bf16.msra.mxu0 0
        %565 = vmatprep.subr.bf16.mxu0 0
        %566 = vmatpush1.bf16.msra.mxu0 0
        %567 = vmatprep.subr.bf16.mxu0 0
        %568 = vmatpush1.bf16.msra.mxu0 0
        %569 = vmatprep.subr.bf16.mxu0 0
        %570 = vmatpush1.bf16.msra.mxu0 0
        %571 = vmatprep.subr.bf16.mxu0 0
        %572 = vmatpush1.bf16.msra.mxu0 0
        %573 = vmatprep.mubr.bf16.mxu0 0
        %574 = vmatmul.mubr.bf16.gmra.mrb[0].mxu0 %v466
        %v575 = vpop.f32.mrb[0].mxu0
        %v576 = vadd.f32 %v491, %v575
        %v577 = vpop.f32.mrb[0].mxu0
        %v578 = vpop.f32.mrb[0].mxu0
        %v579 = vadd.f32 %v491, %v578
        %v580 = vpop.f32.mrb[0].mxu0
        %581 = vmatprep.mubr.bf16.mxu0 0
        %582 = vmatmul.mubr.bf16.gmra.mrb[0].mxu0 %v467
        %v583 = vpop.f32.mrb[0].mxu0
        %v584 = vadd.f32 %v491, %v583
        %v585 = vpop.f32.mrb[0].mxu0
        %v586 = vpop.f32.mrb[0].mxu0
        %v587 = vadd.f32 %v491, %v586
        %v588 = vpop.f32.mrb[0].mxu0
        %589 = vmatprep.mubr.bf16.mxu0 0
        %590 = vmatmul.mubr.bf16.gmra.mrb[0].mxu0 %v468
        %v591 = vpop.f32.mrb[0].mxu0
        %v592 = vadd.f32 %v491, %v591
        %v593 = vpop.f32.mrb[0].mxu0
        %v594 = vpop.f32.mrb[0].mxu0
        %v595 = vadd.f32 %v491, %v594
        %v596 = vpop.f32.mrb[0].mxu0
        %597 = vmatprep.mubr.bf16.mxu0 0
        %598 = vmatmul.mubr.bf16.gmra.mrb[0].mxu0 %v469
        %v599 = vpop.f32.mrb[0].mxu0
        %v600 = vadd.f32 %v491, %v599
        %v601 = vpop.f32.mrb[0].mxu0
        %v602 = vpop.f32.mrb[0].mxu0
        %v603 = vadd.f32 %v491, %v602
        %v604 = vpop.f32.mrb[0].mxu0
        %605 = vdwg.mxu0
        %v606 = vpack.c.bf16 %v579, %v576
        %v607 = vpack.c.bf16 %v587, %v584
        %v608 = vpack.c.bf16 %v595, %v592
        %v609 = vpack.c.bf16 %v603, %v600
        %v614 = vunpack.c.l.b16 %v606
        %v615 = vunpack.c.h.b16 %v606
        %v616 = vunpack.c.l.b16 %v607
        %v617 = vunpack.c.h.b16 %v607
        %v618 = vunpack.c.l.b16 %v608
        %v619 = vunpack.c.h.b16 %v608
        %v620 = vunpack.c.l.b16 %v609
        %v621 = vunpack.c.h.b16 %v609
        %v622 = vpack.c.b16 %v614, %v614
        %v623 = vpack.c.b16 %v615, %v615
        %v624 = vpack.c.b16 %v616, %v616
        %v625 = vpack.c.b16 %v617, %v617
        %v626 = vpack.c.b16 %v618, %v618
        %v627 = vpack.c.b16 %v619, %v619
        %v628 = vpack.c.b16 %v620, %v620
        %v629 = vpack.c.b16 %v621, %v621
        %638 = vst [vmem:[%s334] sm:$0xf] %v622
        %639 = vst [vmem:[%s334 + $0x4] sm:$0xf] %v623
        %640 = vst [vmem:[%s334 + $0x8] sm:$0xf] %v624
        %641 = vst [vmem:[%s334 + $0xc] sm:$0xf] %v625
        %642 = vst [vmem:[%s334 + $0x10] sm:$0xf] %v626
        %643 = vst [vmem:[%s334 + $0x14] sm:$0xf] %v627
        %644 = vst [vmem:[%s334 + $0x18] sm:$0xf] %v628
        %645 = vst [vmem:[%s334 + $0x1c] sm:$0xf] %v629
        %s646 = sand.u32 %s166, 1
        %s647 = scalar_lea.sflag [#allocation4], %s646
        %s648 = sand.u32 %s166, 1
        %s649 = smul.addr %s648, 32
        %s650 = scalar_lea.vmem [#allocation11], %s649
        // Predicated region
        $region61: #{tpu_custom_call.1} parent=39 // pred_check
          %p651 = pneg %p176
        $region62: #{tpu_custom_call.1} parent=39 // pred_check_branch
          %653 = sbr.rel (%p651) target = $region64
        $region63: #{tpu_custom_call.1} parent=39 // pred_region
          %s654 = smul.u32 8, %s28
          %s656 = ssub.s32 512, 512
          %657 = vsyncadd %s647, %s656
          %s658 = smul.addr %s654, 3
          %s659 = sadd.s32 %s29, %s658
          %s660 = smul.addr %s659, 64
          %s661 = scalar_lea.hbm %s5, %s660
          %s662 = sshll.u32 %s650, 4
          %s663 = int_to_ptr.vmem [resolvable:$true] %s662
          %668 = dma.vmem_to_hbm [thread:$0]  %s663, 512, %s661, %s647, 64, 192, 4
        $region64: #{tpu_custom_call.1} parent=39 // pred_fallthru
          _
      $region40: #{tpu_custom_call.1} parent=5 // pred_fallthru
        _
      %p669 = scmp.le.s32.totalorder 2, %s19
      // Predicated region
      $region65: #{tpu_custom_call.1} parent=5 // pred_check
        %p670 = pneg %p669
      $region66: #{tpu_custom_call.1} parent=5 // pred_check_branch
        %672 = sbr.rel (%p670) target = $region68
      $region67: #{tpu_custom_call.1} parent=5 // pred_region
        %s673 = ssub.s32 %s19, 2
        // Predicated region
        $region69: #{tpu_custom_call.1} parent=67 // pred_check
          %p674 = pneg %p182
        $region70: #{tpu_custom_call.1} parent=67 // pred_check_branch
          %676 = sbr.rel (%p674) target = $region72
        $region71: #{tpu_custom_call.1} parent=67 // pred_region
          %s677 = sand.u32 %s167, 1
          %s678 = scalar_lea.sflag [#allocation4], %s677
          %s679 = sand.u32 %s167, 1
          %s680 = smul.addr %s679, 32
          %s681 = scalar_lea.vmem [#allocation11], %s680
          %682 = dma.done %s678, 512
        $region72: #{tpu_custom_call.1} parent=67 // pred_fallthru
          _
      $region68: #{tpu_custom_call.1} parent=5 // pred_fallthru
        _
    $region6: #{tpu_custom_call.1} parent=1 // loop_footer
      %s23 = sadd.s32 1, %s19
    $region7: #{tpu_custom_call.1} parent=1 // loop_footer_branch
      %18 = sbr.rel target = $region3
    $region8: #{tpu_custom_call.1} parent=1 // loop_exit
      _
    %683 = vsyncpa [#allocation3], 1
    %s684 = scalar_lea.sflag [#allocation3], 1
    %685 = vsyncpa %s684, 1
    %686 = vsyncpa [#allocation6], 1
    %687 = vsyncpa [#allocation9], 1
    %s688 = scalar_lea.sflag [#allocation9], 1
    %689 = vsyncpa %s688, 1
    %690 = vsyncpa [#allocation4], 1
    %s691 = scalar_lea.sflag [#allocation4], 1
    %692 = vsyncpa %s691, 1

</llo_original>
